<compile_context>
chip_gen: v7x
topology: tpu7x:2x2x1
jax: 0.10.0
libtpu: 0.0.40
codegen_flags: <defaults>
</compile_context>

<pallas_src>
import functools

import jax
import jax.numpy as jnp
import numpy as np
from jax.experimental import pallas as pl
from jax.experimental.pallas import tpu as pltpu


_DEFAULT_WEIGHTS = dict(level6=0.32, level5=0.08, level4=0.02,
                        level3=0.01, level2=0.005)

_LANE = 128                     # TPU lane width
_LANE_TILE_TARGET = 8192        # max lanes per grid step (multiple of 128)
_DIRECT_MIN_LANES = 1024        # >= this and 128-aligned -> bypass the slab


# ---------------------------------------------------------------------------
# Pallas kernel: one (batch-block, lane-block) tile of the fused BCE
# ---------------------------------------------------------------------------
def _bce_tile_kernel(*refs, balance, const_scale):
    """Per-tile partial sum of the (weighted) binary cross entropy.

    Ref layouts (all (block_b, l_tile) unless noted):
      balance=False, const_scale=None : (pred, tgt, scale (1, l_tile), out)
      balance=False, const_scale=s    : (pred, tgt, out)             [direct]
      balance=True                    : (pred, a, b, out)
          with a = s*tp_w*t and b = s*fn_w*(1-t) prefolded in the wrapper.
    `out` is a (1, 1, 1, 1) partial; the wrapper sums partials over the grid.
    """
    if balance:
        pred_ref, a_ref, b_ref, out_ref = refs
    elif const_scale is None:
        pred_ref, t_ref, scale_ref, out_ref = refs
    else:
        pred_ref, t_ref, out_ref = refs

    pred = pred_ref[...].astype(jnp.float32)
    p = jax.nn.sigmoid(pred)
    # mmflow-exact eps formulation (kept verbatim for forward parity).
    # TODO(synk): optional softplus fast path (fewer EUP ops/element) behind a
    # flag once profiling shows the EUP slot is the binding resource.
    log_p = jnp.log(p + 1e-8)
    log_q = jnp.log(1.0 - p + 1e-8)

    if balance:
        val = -(a_ref[...].astype(jnp.float32) * log_p) \
              - (b_ref[...].astype(jnp.float32) * log_q)
        partial = jnp.sum(val)
    else:
        t = t_ref[...].astype(jnp.float32)
        val = -(t * log_p) - ((1.0 - t) * log_q)
        if const_scale is None:
            partial = jnp.sum(val * scale_ref[...].astype(jnp.float32))
        else:
            partial = jnp.sum(val) * jnp.float32(const_scale)

    out_ref[...] = jnp.reshape(partial, (1, 1, 1, 1))


# ---------------------------------------------------------------------------
# Tiling / VMEM helpers
# ---------------------------------------------------------------------------
def _vmem_limit_bytes():
    """Per-generation VMEM limit: ~96 MiB on 128-MiB parts, ~48 MiB on v7x."""
    try:
        cap = int(getattr(pltpu.get_tpu_info(), "vmem_capacity_bytes", 64 << 20))
    except Exception:
        cap = 64 << 20      # conservative (v7x per-TC) if the query is unavailable
    return int(min(max((cap * 3) // 4, 32 << 20), 96 << 20))


def _round_up(x, m):
    return ((x + m - 1) // m) * m


def _largest_divisor_leq(n, cap):
    best, d = 1, 1
    while d * d <= n:
        if n % d == 0:
            for c in (d, n // d):
                if c <= cap and c > best:
                    best = c
        d += 1
    return best


def _pick_block_b(B, max_rows):
    """Largest batch block that divides B and fits the VMEM row budget."""
    if B <= max_rows:
        return B                      # block == full dim -> always layout-legal
    best = 1
    for cand in range(min(max_rows, B), 0, -1):
        if B % cand == 0:
            if cand % 8 == 0:
                return cand           # prefer sublane-aligned blocks
            best = max(best, cand)
    # TODO(synk): pad the batch + per-row mask instead of a sub-8 divisor
    # fallback (correct, but may force a sublane relayout for odd batch sizes).
    return best


def _partial_sums(pred2d, t2d, extra2d, *, balance, const_scale):
    """Run the fused BCE kernel over a lane/batch-tiled grid; return the sum."""
    assert (extra2d is None) == (const_scale is not None)
    B, L = pred2d.shape
    assert L % _LANE == 0
    vmem_limit = _vmem_limit_bytes()
    n_row_streams = 3 if balance else 2

    # Lane tile: a multiple of 128 that divides L (slabs are pre-padded so the
    # target size always divides; direct entries fall back to a divisor).
    if L <= _LANE_TILE_TARGET:
        l_tile = L
    elif L % _LANE_TILE_TARGET == 0:
        l_tile = _LANE_TILE_TARGET
    else:
        l_tile = _LANE * _largest_divisor_leq(L // _LANE,
                                              _LANE_TILE_TARGET // _LANE)

    # Batch block: fill ~half the VMEM limit with double-buffered input streams.
    step_row_bytes = 2 * n_row_streams * l_tile * 4
    max_rows = max(1, int((vmem_limit // 2) // step_row_bytes))
    block_b = _pick_block_b(B, max_rows)

    nb, nl = B // block_b, L // l_tile

    row_spec = pl.BlockSpec((block_b, l_tile), lambda b, l: (b, l))
    in_specs = [row_spec, row_spec]
    args = [pred2d, t2d]
    if extra2d is not None:
        if balance:
            in_specs.append(row_spec)                                  # b-slab
        else:
            in_specs.append(pl.BlockSpec((1, l_tile), lambda b, l: (0, l)))
        args.append(extra2d)

    kern = functools.partial(_bce_tile_kernel, balance=balance,
                             const_scale=const_scale)
    partials = pl.pallas_call(
        kern,
        out_shape=jax.ShapeDtypeStruct((nb, nl, 1, 1), jnp.float32),
        grid=(nb, nl),
        in_specs=in_specs,
        out_specs=pl.BlockSpec((1, 1, 1, 1), lambda b, l: (b, l, 0, 0)),
        compiler_params=pltpu.CompilerParams(
            dimension_semantics=("parallel", "parallel"),   # megacore-shardable
            vmem_limit_bytes=vmem_limit),
    )(*args)
    return jnp.sum(partials)


# ---------------------------------------------------------------------------
# Glue: adaptive average pooling (exact for divisible sizes) + slab building
# ---------------------------------------------------------------------------
def _adaptive_avg_pool2d(x, oh, ow):
    B, C, H, W = x.shape
    if (H, W) == (oh, ow):
        return x
    assert H % oh == 0 and W % ow == 0, "only divisible output sizes supported"
    # TODO(synk): non-divisible adaptive pooling (variable windows) not implemented
    fh, fw = H // oh, W // ow
    return x.reshape(B, C, oh, fh, ow, fw).mean(axis=(3, 5))


def _pool_targets_progressive(target, sizes):
    """Pool target to every required (h, w), reusing coarser results."""
    B, C, H, W = target.shape
    pooled = {(H, W): target}
    for (h, w) in sorted(set(sizes), key=lambda s: -(s[0] * s[1])):
        if (h, w) in pooled:
            continue
        srcs = [(sh, sw) for (sh, sw) in pooled if sh % h == 0 and sw % w == 0]
        if srcs:
            sh, sw = min(srcs, key=lambda s: s[0] * s[1])
            pooled[(h, w)] = _adaptive_avg_pool2d(pooled[(sh, sw)], h, w)
        else:
            pooled[(h, w)] = _adaptive_avg_pool2d(target, h, w)
    return pooled


def _slab_loss(slab_entries, B, balance):
    """Small / ragged (level, pred) entries: lane-dense padded slab(s)."""
    pred_parts, x_parts, y_parts, scale_parts = [], [], [], []
    for (p, t, n, h, w, s_entry) in slab_entries:
        npad = _round_up(n, _LANE)
        pf = p.reshape(B, n)
        tf = t.reshape(B, n)
        if balance:
            # Cheap first pass (plain JAX): per-row class-balance sums, folded
            # together with s_entry into the a / b slabs (pads stay exactly 0).
            tf32 = tf.astype(jnp.float32)
            sum_t = jnp.sum(tf32, axis=1)                                  # (B,)
            sum_p = jnp.sum(jax.nn.sigmoid(pf.astype(jnp.float32)), axis=1)
            hw = float(h * w)
            tp_w = 0.5 * hw / (sum_t + sum_p + 1e-8)
            fn_w = 0.5 * hw / ((float(n) - sum_t) + (float(n) - sum_p) + 1e-8)
            a = (s_entry * tp_w)[:, None] * tf32
            b = (s_entry * fn_w)[:, None] * (1.0 - tf32)
            x_parts.append(jnp.pad(a, ((0, 0), (0, npad - n))) if npad != n else a)
            y_parts.append(jnp.pad(b, ((0, 0), (0, npad - n))) if npad != n else b)
        else:
            x_parts.append(jnp.pad(tf, ((0, 0), (0, npad - n))) if npad != n else tf)
            s = np.zeros((1, npad), np.float32)
            s[0, :n] = s_entry              # weight/denom/num_preds + pad mask
            scale_parts.append(s)
        pred_parts.append(jnp.pad(pf, ((0, 0), (0, npad - n))) if npad != n else pf)

    L0 = sum(part.shape[1] for part in pred_parts)
    L = _round_up(L0, _LANE_TILE_TARGET) if L0 > _LANE_TILE_TARGET else L0
    extra = L - L0
    if extra:                               # tail pad so l_tile divides L
        pred_parts.append(jnp.zeros((B, extra), pred_parts[0].dtype))
        x_parts.append(jnp.zeros((B, extra), x_parts[0].dtype))
        if balance:
            y_parts.append(jnp.zeros((B, extra), jnp.float32))
        else:
            scale_parts.append(np.zeros((1, extra), np.float32))

    pred_slab = jnp.concatenate(pred_parts, axis=1)
    x_slab = jnp.concatenate(x_parts, axis=1)
    if balance:
        y_slab = jnp.concatenate(y_parts, axis=1)
        return _partial_sums(pred_slab, x_slab, y_slab,
                             balance=True, const_scale=None)
    scale_row = jnp.asarray(np.concatenate(scale_parts, axis=1))
    return _partial_sums(pred_slab, x_slab, scale_row,
                         balance=False, const_scale=None)


# ---------------------------------------------------------------------------
# Public API (mirrors the torch module)
# ---------------------------------------------------------------------------
def multi_levels_binary_cross_entropy(preds_dict, target,
                                      weights=_DEFAULT_WEIGHTS,
                                      balance=False, reduction="sum"):
    assert preds_dict.keys() == weights.keys(), \
        "Error: Keys of prediction do not match keys of weights!"
    assert reduction in ("mean", "sum")
    B = target.shape[0]

    # Flatten (level, pred) entries in the same order as the torch loop.
    entries, sizes = [], []
    num_preds = 1
    for k in weights.keys():
        cur_pred = preds_dict[k] if isinstance(preds_dict[k], (tuple, list)) \
            else [preds_dict[k]]
        num_preds = len(cur_pred)   # torch-parity quirk: LAST level's count is used
        h, w = cur_pred[0].shape[2:]
        sizes.append((int(h), int(w)))
        for p in cur_pred:
            entries.append((p, float(weights[k]), int(h), int(w)))

    pooled = _pool_targets_progressive(target, sizes)

    loss_terms, slab_entries = [], []
    for (p, w_l, h, w) in entries:
        t = pooled[(h, w)]
        assert p.shape == t.shape, \
            f"pred shape {p.shape} does not match target shape {t.shape}."
        n = int(np.prod(p.shape[1:]))                 # C*h*w (C == 1 per spec)
        denom = float(B) if reduction == "sum" else float(B * n)
        s_entry = w_l / (denom * num_preds)
        if (not balance) and n % _LANE == 0 and n >= _DIRECT_MIN_LANES:
            # Big / aligned levels: no pad+concat copy; scale is a compile-time
            # scalar folded into the kernel. reshape is a free contiguous view.
            loss_terms.append(_partial_sums(
                p.reshape(B, n), t.reshape(B, n), None,
                balance=False, const_scale=s_entry))
        else:
            slab_entries.append((p, t, n, h, w, s_entry))

    if slab_entries:
        loss_terms.append(_slab_loss(slab_entries, B, bool(balance)))

    total = loss_terms[0]
    for lt in loss_terms[1:]:
        total = total + lt
    return total


class MultiLevelBCE:
    def __init__(self, weights=_DEFAULT_WEIGHTS, balance=False, reduction="sum"):
        assert isinstance(balance, bool)
        assert isinstance(weights, dict)
        assert reduction in ("mean", "sum")
        self.weights = weights
        self.balance = balance
        self.reduction = reduction

    def __call__(self, preds_dict, target):
        return multi_levels_binary_cross_entropy(
            preds_dict, target, weights=self.weights,
            balance=self.balance, reduction=self.reduction)


# ---------------------------------------------------------------------------
# Pure-JAX torch-faithful reference (for correctness check)
# ---------------------------------------------------------------------------
def _bce_ref(pred, target, balance, reduction):
    b = pred.shape[0]
    h, w = pred.shape[2:]
    p = jax.nn.sigmoid(pred.astype(jnp.float32))
    t = target.astype(jnp.float32)
    if balance:
        tp_w = 0.5 * h * w / (jnp.sum(t, axis=(1, 2, 3)) + jnp.sum(p, axis=(1, 2, 3)) + 1e-8)
        fn_w = 0.5 * h * w / (jnp.sum(1 - t, axis=(1, 2, 3)) + jnp.sum(1 - p, axis=(1, 2, 3)) + 1e-8)
    else:
        tp_w = jnp.ones(b)
        fn_w = jnp.ones(b)
    tp = -t * jnp.log(p + 1e-8) * tp_w.reshape(b, 1, 1, 1)
    fn = -(1 - t) * jnp.log(1 - p + 1e-8) * fn_w.reshape(b, 1, 1, 1)
    bce = tp + fn
    return jnp.mean(bce) if reduction == "mean" else jnp.sum(bce) / b


def _multi_level_ref(preds_dict, target, weights, balance, reduction):
    loss = 0.0
    for k in weights.keys():
        cur_pred = preds_dict[k] if isinstance(preds_dict[k], (tuple, list)) else [preds_dict[k]]
        num_preds = len(cur_pred)
        h, w = cur_pred[0].shape[2:]
        cur_target = _adaptive_avg_pool2d(target, h, w)
        for pred in cur_pred:
            loss = loss + _bce_ref(pred, cur_target, balance, reduction) * weights[k]
    return loss / num_preds


# ---------------------------------------------------------------------------
if __name__ == "__main__":
    key = jax.random.PRNGKey(0)
    B, H, W = 2, 32, 32
    k_t, k2, k3, k4, k5, k6 = jax.random.split(key, 6)

    # ground-truth occlusion map in [0, 1], shape (B, 1, H, W)
    target = jax.random.uniform(k_t, (B, 1, H, W), dtype=jnp.float32)

    # multi-level predicted occlusion logits, (B, 1, H_l, W_l)
    preds = {
        "level6": jax.random.normal(k6, (B, 1, H // 16, W // 16), jnp.float32),
        "level5": jax.random.normal(k5, (B, 1, H // 8, W // 8), jnp.float32),
        "level4": jax.random.normal(k4, (B, 1, H // 4, W // 4), jnp.float32),
        "level3": jax.random.normal(k3, (B, 1, H // 2, W // 2), jnp.float32),
        "level2": jax.random.normal(k2, (B, 1, H, W), jnp.float32),
    }

    # default config: balance=False, reduction='sum'
    # (exercises the direct path for level2 and the slab path for the rest)
    loss = MultiLevelBCE(balance=False, reduction="sum")(preds, target)
    loss = jax.block_until_ready(loss)
    ref = _multi_level_ref(preds, target, _DEFAULT_WEIGHTS, False, "sum")
    np.testing.assert_allclose(np.asarray(loss), np.asarray(ref),
                               rtol=1e-4, atol=1e-5)

    # also exercise the balance=True / 'mean' (all-slab) path of the kernel
    loss_b = MultiLevelBCE(balance=True, reduction="mean")(preds, target)
    loss_b = jax.block_until_ready(loss_b)
    ref_b = _multi_level_ref(preds, target, _DEFAULT_WEIGHTS, True, "mean")
    np.testing.assert_allclose(np.asarray(loss_b), np.asarray(ref_b),
                               rtol=1e-4, atol=1e-5)

    print("KERNEL_OK")
</pallas_src>

<mosaic_0001>
module attributes {stable_mosaic.version = 11 : i64} {
  func.func @_bce_tile_kernel(%arg0: i32, %arg1: i32, %arg2: memref<2x1024xf32, #tpu.memory_space<vmem>>, %arg3: memref<2x1024xf32, #tpu.memory_space<vmem>>, %arg4: memref<1x1x1x1xf32, #tpu.memory_space<vmem>>) attributes {dimension_semantics = [#tpu.dimension_semantics<parallel>, #tpu.dimension_semantics<parallel>], iteration_bounds = array<i64: 1, 1>, scalar_prefetch = 0 : i64, scratch_operands = 0 : i64, tpu.core_type = #tpu.core_type<tc>, window_params = [{transform_indices = @transform_0, window_bounds = array<i64: 2, 1024>}, {transform_indices = @transform_1, window_bounds = array<i64: 2, 1024>}, {transform_indices = @transform_2, window_bounds = array<i64: 1, 1, 1, 1>}]} {
    %c0 = arith.constant 0 : index
    %c0_0 = arith.constant 0 : index
    %0 = vector.load %arg2[%c0, %c0_0] : memref<2x1024xf32, #tpu.memory_space<vmem>>, vector<2x1024xf32>
    %1 = arith.negf %0 : vector<2x1024xf32>
    %2 = math.exp %1 : vector<2x1024xf32>
    %cst = arith.constant 1.000000e+00 : f32
    %3 = vector.broadcast %cst : f32 to vector<2x1024xf32>
    %4 = arith.addf %3, %2 : vector<2x1024xf32>
    %5 = arith.divf %3, %4 : vector<2x1024xf32>
    %cst_1 = arith.constant 9.99999993E-9 : f32
    %6 = vector.broadcast %cst_1 : f32 to vector<2x1024xf32>
    %7 = arith.addf %5, %6 : vector<2x1024xf32>
    %8 = math.log %7 : vector<2x1024xf32>
    %cst_2 = arith.constant 1.000000e+00 : f32
    %9 = vector.broadcast %cst_2 : f32 to vector<2x1024xf32>
    %10 = arith.subf %9, %5 : vector<2x1024xf32>
    %cst_3 = arith.constant 9.99999993E-9 : f32
    %11 = vector.broadcast %cst_3 : f32 to vector<2x1024xf32>
    %12 = arith.addf %10, %11 : vector<2x1024xf32>
    %13 = math.log %12 : vector<2x1024xf32>
    %c0_4 = arith.constant 0 : index
    %c0_5 = arith.constant 0 : index
    %14 = vector.load %arg3[%c0_4, %c0_5] : memref<2x1024xf32, #tpu.memory_space<vmem>>, vector<2x1024xf32>
    %15 = arith.mulf %14, %8 : vector<2x1024xf32>
    %cst_6 = arith.constant 0.000000e+00 : f32
    %16 = vector.broadcast %cst_6 : f32 to vector<2x1024xf32>
    %17 = arith.subf %16, %15 : vector<2x1024xf32>
    %cst_7 = arith.constant 1.000000e+00 : f32
    %18 = vector.broadcast %cst_7 : f32 to vector<2x1024xf32>
    %19 = arith.subf %18, %14 : vector<2x1024xf32>
    %20 = arith.mulf %19, %13 : vector<2x1024xf32>
    %21 = arith.subf %17, %20 : vector<2x1024xf32>
    %22 = vector.shape_cast %21 : vector<2x1024xf32> to vector<1x2x1024xf32>
    %cst_8 = arith.constant dense<0.000000e+00> : vector<1xf32>
    %23 = vector.multi_reduction <add>, %22, %cst_8 [1, 2] : vector<1x2x1024xf32> to vector<1xf32>
    %24 = vector.shape_cast %23 : vector<1xf32> to vector<1x1x1xf32>
    %25 = vector.extract %24[0, 0, 0] : f32 from vector<1x1x1xf32>
    %cst_9 = arith.constant 2.500000e-03 : f32
    %26 = arith.mulf %25, %cst_9 : f32
    %27 = vector.broadcast %26 : f32 to vector<1x1x1x1xf32>
    %c0_10 = arith.constant 0 : index
    %c0_11 = arith.constant 0 : index
    %c0_12 = arith.constant 0 : index
    %c0_13 = arith.constant 0 : index
    %28 = vector.load %arg4[%c0_10, %c0_11, %c0_12, %c0_13] : memref<1x1x1x1xf32, #tpu.memory_space<vmem>>, vector<1x1x1x1xf32>
    tpu.vector_store %arg4[%c0_10, %c0_11, %c0_12, %c0_13], %27 {strides = array<i32>} : memref<1x1x1x1xf32, #tpu.memory_space<vmem>>, vector<1x1x1x1xf32>,
    return
  }
  func.func @transform_0(%arg0: i32, %arg1: i32) -> (i32, i32) {
    %c0_i32 = arith.constant 0 : i32
    return %arg0, %arg1 : i32, i32
  }
  func.func @transform_1(%arg0: i32, %arg1: i32) -> (i32, i32) {
    %c0_i32 = arith.constant 0 : i32
    return %arg0, %arg1 : i32, i32
  }
  func.func @transform_2(%arg0: i32, %arg1: i32) -> (i32, i32, i32, i32) {
    %c0_i32 = arith.constant 0 : i32
    %c0_i32_0 = arith.constant 0 : i32
    %c0_i32_1 = arith.constant 0 : i32
    return %arg0, %arg1, %c0_i32, %c0_i32_0 : i32, i32, i32, i32
  }
}

</mosaic_0001>

<llo_original>
// kernel: tpu_custom_call.1
$region0: #{tpu_custom_call.1}
  #allocation0 [shape = 'u32[]', space=smem, size = 0x4, offset = 0x4, fixed_abs, tag = 'smem constant byte address 0x4 - core index']
  #allocation1 [shape = 'u32[144,128]{1,0:T(1,128)}', space=vmem, size = 0x12000, scoped, tag = 'internal scratch']
  %s0 = inlined_call_operand.hbm [shape: f32[2,1024], index: 0, kind: input, shape index: {}]
  %s1 = inlined_call_operand.hbm [shape: f32[2,1024], index: 1, kind: input, shape index: {}]
  %s2 = inlined_call_operand.hbm [shape: f32[1,1,1,1], index: 2, kind: output, shape index: {}]
  %s3 = sld [smem:[#allocation0]]
  $region26: #{tpu_custom_call.1} parent=0
    _
  %s5 = ssub.s32 1, %s3
  %s6 = scalar_select 0, %s5, %s3
  $region1: #{tpu_custom_call.1} parent=0
    #allocation2 [shape = 'u8[8192]{0}', space=vmem, size = 0x2000, scoped, tag = 'input window, operand 0, single buffered']
    #allocation3 [shape = 's32[1]{0}', space=sflag, size = 0x4, scoped, tag = 'scoped memory for tpu_custom_call.1']
    #allocation4 [shape = 's32[1]{0}', space=sflag, size = 0x4, scoped, tag = 'scoped memory for tpu_custom_call.1']
    #allocation5 [shape = 'u8[8192]{0}', space=vmem, size = 0x2000, scoped, tag = 'input window, operand 1, single buffered']
    #allocation6 [shape = 's32[1]{0}', space=sflag, size = 0x4, scoped, tag = 'scoped memory for tpu_custom_call.1']
    #allocation7 [shape = 'u8[512]{0}', space=vmem, size = 0x400, scoped, tag = 'output window, operand 0, single buffered']
    %7 = vsyncpa [#allocation3], 0
    %8 = vsyncpa [#allocation6], 0
    %9 = vsyncpa [#allocation4], 0
    // Predicated region
    $region2: #{tpu_custom_call.1} parent=1 // pred_check
      _
    $region3: #{tpu_custom_call.1} parent=1 // pred_check_branch
      %11 = sbr.rel (0) target = $region5
    $region4: #{tpu_custom_call.1} parent=1 // pred_region
      %s13 = ssub.s32 256, 256
      %14 = vsyncadd [#allocation3], %s13
      %s16 = sshll.u32 [#allocation2], 4
      %s17 = int_to_ptr.vmem [resolvable:$true] %s16
      %19 = dma.hbm_to_vmem [thread:$0]  %s0, 256, %s17, [#allocation3]
    $region5: #{tpu_custom_call.1} parent=1 // pred_fallthru
      _
    // Predicated region
    $region6: #{tpu_custom_call.1} parent=1 // pred_check
      _
    $region7: #{tpu_custom_call.1} parent=1 // pred_check_branch
      %21 = sbr.rel (0) target = $region9
    $region8: #{tpu_custom_call.1} parent=1 // pred_region
      %s23 = ssub.s32 256, 256
      %24 = vsyncadd [#allocation6], %s23
      %s26 = sshll.u32 [#allocation5], 4
      %s27 = int_to_ptr.vmem [resolvable:$true] %s26
      %29 = dma.hbm_to_vmem [thread:$0]  %s1, 256, %s27, [#allocation6]
    $region9: #{tpu_custom_call.1} parent=1 // pred_fallthru
      _
    // Predicated region
    $region10: #{tpu_custom_call.1} parent=1 // pred_check
      _
    $region11: #{tpu_custom_call.1} parent=1 // pred_check_branch
      %31 = sbr.rel (0) target = $region13
    $region12: #{tpu_custom_call.1} parent=1 // pred_region
      %32 = dma.done [#allocation3], 256
    $region13: #{tpu_custom_call.1} parent=1 // pred_fallthru
      _
    // Predicated region
    $region14: #{tpu_custom_call.1} parent=1 // pred_check
      _
    $region15: #{tpu_custom_call.1} parent=1 // pred_check_branch
      %34 = sbr.rel (0) target = $region17
    $region16: #{tpu_custom_call.1} parent=1 // pred_region
      %35 = dma.done [#allocation6], 256
    $region17: #{tpu_custom_call.1} parent=1 // pred_fallthru
      _
    %v36 = vld [vmem:[#allocation2] sm:$0xff]
    %v37 = vld [vmem:[#allocation2 + $0x8] sm:$0xff]
    %v38 = vxor.u32 %v36, 2147483648
    %v39 = vxor.u32 %v37, 2147483648
    %v40 = vmul.f32 %v38, 1.442695
    %v41 = vpow.pop %v40
    %v42 = vmul.f32 %v39, 1.442695
    %v43 = vpow.pop %v42
    %v44 = vadd.f32 %v41, 1.0
    %v45 = vadd.f32 %v43, 1.0
    %v46 = vrcp.pop %v44
    %v47 = vmul.f32 1.0, %v46
    %v48 = vrcp.pop %v45
    %v49 = vmul.f32 1.0, %v48
    %v50 = vadd.f32 %v47, 1e-08
    %v51 = vadd.f32 %v49, 1e-08
    %v52 = vlog2.pop %v50
    %v53 = vmul.f32 %v52, 0.6931472
    %v54 = vlog2.pop %v51
    %v55 = vmul.f32 %v54, 0.6931472
    %v56 = vsub.f32 1.0, %v47
    %v57 = vsub.f32 1.0, %v49
    %v58 = vadd.f32 %v56, 1e-08
    %v59 = vadd.f32 %v57, 1e-08
    %v60 = vlog2.pop %v58
    %v61 = vmul.f32 %v60, 0.6931472
    %v62 = vlog2.pop %v59
    %v63 = vmul.f32 %v62, 0.6931472
    %v64 = vld [vmem:[#allocation5] sm:$0xff]
    %v65 = vld [vmem:[#allocation5 + $0x8] sm:$0xff]
    %v66 = vmul.f32 %v64, %v53
    %v67 = vmul.f32 %v65, %v55
    %v68 = vsub.f32 0.0, %v66
    %v69 = vsub.f32 0.0, %v67
    %v70 = vsub.f32 1.0, %v64
    %v71 = vsub.f32 1.0, %v65
    %v72 = vmul.f32 %v70, %v61
    %v73 = vmul.f32 %v71, %v63
    %v74 = vsub.f32 %v68, %v72
    %v75 = vsub.f32 %v69, %v73
    %v78 = vcombine.high %v74, %v74
    %v80 = vunpack.c.l.s4 1983009808
    %v81 = vunpack.c.0.s8 %v80
    %v82 = vlaneseq
    %v83 = vshrl.u32 %v82, 7
    %v84 = vsub.s32 %v81, %v83
    %v85 = vrot.slane %v74, %v84
    %v87 = vunpack.c.l.s4 1983009808
    %v88 = vunpack.c.0.s8 %v87
    %v89 = vlaneseq
    %v90 = vshrl.u32 %v89, 7
    %v91 = vsub.s32 %v88, %v90
    %v92 = vrot.slane %v78, %v91
    %v93 = vcombine.high %v85, %v85
    %v94 = vcombine.high %v92, %v92
    %v95 = vcombine.high %v75, %v75
    %v97 = vunpack.c.l.s4 1983009808
    %v98 = vunpack.c.0.s8 %v97
    %v99 = vlaneseq
    %v100 = vshrl.u32 %v99, 7
    %v101 = vsub.s32 %v98, %v100
    %v102 = vrot.slane %v75, %v101
    %v104 = vunpack.c.l.s4 1983009808
    %v105 = vunpack.c.0.s8 %v104
    %v106 = vlaneseq
    %v107 = vshrl.u32 %v106, 7
    %v108 = vsub.s32 %v105, %v107
    %v109 = vrot.slane %v95, %v108
    %v110 = vcombine.high %v102, %v102
    %v111 = vcombine.high %v109, %v109
    %vm120 = vcmask 1041408
    %v121 = vsel %vm120, %v85, 0.0
    %v122 = vsel %vm120, %v93, 0.0
    %v123 = vadd.f32 %v121, %v122
    %v124 = vsel %vm120, %v92, 0.0
    %v125 = vadd.f32 %v123, %v124
    %v126 = vsel %vm120, %v94, 0.0
    %v127 = vadd.f32 %v125, %v126
    %v128 = vsel %vm120, %v102, 0.0
    %v129 = vadd.f32 %v127, %v128
    %v130 = vsel %vm120, %v110, 0.0
    %v131 = vadd.f32 %v129, %v130
    %v132 = vsel %vm120, %v109, 0.0
    %v133 = vadd.f32 %v131, %v132
    %v134 = vsel %vm120, %v111, 0.0
    %v135 = vadd.f32 %v133, %v134
    %136 = vadd.xlane.f32.xlu0 %v135
    %v137 = vpop.xlane.xlu0 %136
    %v138 = vrot.slane %v137, 4
    %v139 = vadd.f32 %v137, %v138
    %v140 = vrot.slane %v139, 2
    %v141 = vadd.f32 %v139, %v140
    %v142 = vrot.slane %v141, 1
    %v143 = vadd.f32 %v141, %v142
    %s144 = vtos %v143
    %s145 = smul.f32 %s144, 0.0025
    %v146 = vstv %s145
    %vm147 = vcmask 0
    %148 = vst.msk [vmem:[#allocation7] sm:$0x1] %vm147, %v146
    // Predicated region
    $region18: #{tpu_custom_call.1} parent=1 // pred_check
      _
    $region19: #{tpu_custom_call.1} parent=1 // pred_check_branch
      %150 = sbr.rel (0) target = $region21
    $region20: #{tpu_custom_call.1} parent=1 // pred_region
      %s152 = ssub.s32 16, 16
      %153 = vsyncadd [#allocation4], %s152
      %s155 = sshll.u32 [#allocation7], 4
      %s156 = int_to_ptr.vmem [resolvable:$true] %s155
      %158 = dma.vmem_to_hbm [thread:$0]  %s156, 16, %s2, [#allocation4]
    $region21: #{tpu_custom_call.1} parent=1 // pred_fallthru
      _
    // Predicated region
    $region22: #{tpu_custom_call.1} parent=1 // pred_check
      _
    $region23: #{tpu_custom_call.1} parent=1 // pred_check_branch
      %160 = sbr.rel (0) target = $region25
    $region24: #{tpu_custom_call.1} parent=1 // pred_region
      %161 = dma.done [#allocation4], 16
    $region25: #{tpu_custom_call.1} parent=1 // pred_fallthru
      _
    %162 = vsyncpa [#allocation3], 1
    %163 = vsyncpa [#allocation6], 1
    %164 = vsyncpa [#allocation4], 1

</llo_original>
